<compile_context>
chip_gen: v7x
topology: tpu7x:2x2x1
jax: 0.10.0
libtpu: 0.0.40
codegen_flags: <defaults>
</compile_context>

<pallas_src>
import functools

import jax
import jax.numpy as jnp
from jax.experimental import pallas as pl
from jax.experimental.pallas import tpu as pltpu


def _round_up(x, m):
    return ((x + m - 1) // m) * m


# ---------------------------------------------------------------------------
# Kernel 1: fused linear  y = x @ W + b   (tiled over rows of x)
# ---------------------------------------------------------------------------
def _linear_kernel(x_ref, w_ref, b_ref, o_ref):
    x = x_ref[...]                                                  # (tm, Cin)
    acc = jnp.dot(x, w_ref[...], preferred_element_type=jnp.float32)
    acc = acc + b_ref[...].astype(jnp.float32)                      # (tm, Cout)
    o_ref[...] = acc.astype(o_ref.dtype)


def linear_forward(x2d, w, b, *, tile_m=256):
    """x2d: (M, Cin), w: (Cin, Cout), b: (Cout,) -> (M, Cout)."""
    M, Cin = x2d.shape
    Cout = w.shape[1]

    # Large row tiles keep the MXU fed and amortize per-grid-step overhead.
    # Pad M so the grid divides evenly (no masked partial stores).
    tm = min(tile_m, _round_up(M, 8))
    Mp = _round_up(M, tm)
    if Mp != M:
        x2d = jnp.pad(x2d, ((0, Mp - M), (0, 0)))

    b2 = b.reshape(1, Cout)
    grid = (Mp // tm,)

    cost = pl.CostEstimate(
        flops=2 * Mp * Cin * Cout,
        transcendentals=0,
        bytes_accessed=4 * (Mp * Cin + Cin * Cout + Cout + Mp * Cout),
    )

    out = pl.pallas_call(
        _linear_kernel,
        out_shape=jax.ShapeDtypeStruct((Mp, Cout), x2d.dtype),
        grid_spec=pltpu.PrefetchScalarGridSpec(
            num_scalar_prefetch=0,
            grid=grid,
            in_specs=[
                pl.BlockSpec((tm, Cin), lambda i: (i, 0)),    # x row tile
                pl.BlockSpec((Cin, Cout), lambda i: (0, 0)),  # W (resident)
                pl.BlockSpec((1, Cout), lambda i: (0, 0)),    # bias (resident)
            ],
            out_specs=pl.BlockSpec((tm, Cout), lambda i: (i, 0)),
        ),
        compiler_params=pltpu.CompilerParams(
            dimension_semantics=("parallel",)),
        cost_estimate=cost,
    )(x2d, w, b2)
    return out[:M]


# ---------------------------------------------------------------------------
# Kernel 2: attention core  softmax(q k^T * scale) @ v
#   grid over batch; all heads of one batch element per grid step
# ---------------------------------------------------------------------------
def _attn_core_kernel(q_ref, k_ref, v_ref, o_ref, *, scale):
    q = q_ref[...]                                                  # (H, N, hd)
    k = k_ref[...]
    v = v_ref[...]
    s = jnp.einsum("hqd,hkd->hqk", q, k,
                   preferred_element_type=jnp.float32) * scale      # (H, N, N)
    m = jnp.max(s, axis=-1, keepdims=True)
    p = jnp.exp(s - m)
    denom = jnp.sum(p, axis=-1, keepdims=True)
    p = p / denom                                                    # softmax
    # attn_drop has p=0.0 -> identity.
    o = jnp.einsum("hqk,hkd->hqd", p.astype(v.dtype), v,
                   preferred_element_type=jnp.float32)               # (H, N, hd)
    o_ref[...] = o.astype(o_ref.dtype)


def attention_core(q, k, v, scale):
    """q, k, v: (B, H, N, hd) -> (B, H, N, hd)."""
    B, H, N, hd = q.shape
    kernel = functools.partial(_attn_core_kernel, scale=scale)
    spec = pl.BlockSpec((None, H, N, hd), lambda b: (b, 0, 0, 0))
    cost = pl.CostEstimate(
        flops=4 * B * H * N * N * hd + 4 * B * H * N * N,
        transcendentals=B * H * N * N,
        bytes_accessed=4 * (4 * B * H * N * hd),
    )
    return pl.pallas_call(
        kernel,
        out_shape=jax.ShapeDtypeStruct((B, H, N, hd), q.dtype),
        grid_spec=pltpu.PrefetchScalarGridSpec(
            num_scalar_prefetch=0,
            grid=(B,),
            in_specs=[spec, spec, spec],
            out_specs=spec,
        ),
        compiler_params=pltpu.CompilerParams(
            dimension_semantics=("parallel",)),
        cost_estimate=cost,
    )(q, k, v)


# ---------------------------------------------------------------------------
# Full Attention forward (mirrors the PyTorch module, inference semantics)
# ---------------------------------------------------------------------------
def attention_forward(x, w_qkv, b_qkv, w_proj, b_proj, *, num_heads):
    B, N, C = x.shape
    H = num_heads
    hd = C // H
    scale = float(hd) ** (-0.5)

    x2d = x.reshape(B * N, C)
    qkv = linear_forward(x2d, w_qkv, b_qkv)                          # (B*N, 3C)
    qkv = qkv.reshape(B, N, 3, H, hd)
    qkv = jnp.transpose(qkv, (2, 0, 3, 1, 4))                        # (3,B,H,N,hd)
    q, k, v = qkv[0], qkv[1], qkv[2]

    o = attention_core(q, k, v, scale)                               # (B,H,N,hd)
    o = jnp.transpose(o, (0, 2, 1, 3)).reshape(B * N, C)

    out = linear_forward(o, w_proj, b_proj)                          # (B*N, C)
    # proj_drop has p=0.0 -> identity.
    return out.reshape(B, N, C)


# Pure-JAX reference (matches the PyTorch forward exactly).
def ref_attention(x, w_qkv, b_qkv, w_proj, b_proj, num_heads):
    B, N, C = x.shape
    H = num_heads
    hd = C // H
    scale = float(hd) ** (-0.5)
    qkv = (x @ w_qkv + b_qkv).reshape(B, N, 3, H, hd)
    qkv = jnp.transpose(qkv, (2, 0, 3, 1, 4))
    q, k, v = qkv[0], qkv[1], qkv[2]
    attn = jnp.einsum("bhqd,bhkd->bhqk", q, k) * scale
    attn = jax.nn.softmax(attn, axis=-1)
    o = jnp.einsum("bhqk,bhkd->bhqd", attn, v)
    o = jnp.transpose(o, (0, 2, 1, 3)).reshape(B, N, C)
    return o @ w_proj + b_proj


if __name__ == "__main__":
    # Small shapes: batch=2, seq=16, dim=64, heads=8 (head_dim=8).
    B, N, C, H = 2, 16, 64, 8
    key = jax.random.PRNGKey(0)
    kx, k1, k2, k3 = jax.random.split(key, 4)

    x = jax.random.normal(kx, (B, N, C), jnp.float32)
    # Weights stored (in, out); qkv_bias=False in the module -> zero bias.
    w_qkv = 0.02 * jax.random.normal(k1, (C, 3 * C), jnp.float32)
    b_qkv = jnp.zeros((3 * C,), jnp.float32)
    w_proj = 0.02 * jax.random.normal(k2, (C, C), jnp.float32)
    b_proj = 0.02 * jax.random.normal(k3, (C,), jnp.float32)

    out = attention_forward(x, w_qkv, b_qkv, w_proj, b_proj, num_heads=H)
    jax.block_until_ready(out)

    ref = ref_attention(x, w_qkv, b_qkv, w_proj, b_proj, H)
    assert out.shape == (B, N, C)
    assert jnp.allclose(out, ref, atol=1e-5, rtol=1e-5), "mismatch vs reference"

    # TODO(synk): return_attention=True branch (also returning the attention
    # matrix) is not exposed; only the default forward path is implemented.
    print("KERNEL_OK")
</pallas_src>

<mosaic_0001>
module attributes {stable_mosaic.version = 11 : i64} {
  func.func @_linear_kernel(%arg0: i32, %arg1: memref<32x64xf32, #tpu.memory_space<vmem>>, %arg2: memref<64x192xf32, #tpu.memory_space<vmem>>, %arg3: memref<1x192xf32, #tpu.memory_space<vmem>>, %arg4: memref<32x192xf32, #tpu.memory_space<vmem>>) attributes {dimension_semantics = [#tpu.dimension_semantics<parallel>], iteration_bounds = array<i64: 1>, scalar_prefetch = 0 : i64, scratch_operands = 0 : i64, tpu.core_type = #tpu.core_type<tc>, window_params = [{transform_indices = @transform_0, window_bounds = array<i64: 32, 64>}, {pipeline_mode = #tpu.pipeline_mode<synchronous>, transform_indices = @transform_1, window_bounds = array<i64: 64, 192>}, {pipeline_mode = #tpu.pipeline_mode<synchronous>, transform_indices = @transform_2, window_bounds = array<i64: 1, 192>}, {transform_indices = @transform_3, window_bounds = array<i64: 32, 192>}]} {
    %c0 = arith.constant 0 : index
    %c0_0 = arith.constant 0 : index
    %0 = vector.load %arg1[%c0, %c0_0] : memref<32x64xf32, #tpu.memory_space<vmem>>, vector<32x64xf32>
    %c0_1 = arith.constant 0 : index
    %c0_2 = arith.constant 0 : index
    %1 = vector.load %arg2[%c0_1, %c0_2] : memref<64x192xf32, #tpu.memory_space<vmem>>, vector<64x192xf32>
    %cst = arith.constant dense<0.000000e+00> : vector<32x192xf32>
    %2 = tpu.matmul %0, %1, %cst {dimension_numbers = #tpu.dot_dimension_numbers<[1], [0], [0], [1], [0, 0, 1, 1], [], []>} : vector<32x64xf32>, vector<64x192xf32>, vector<32x192xf32> -> vector<32x192xf32>
    %c0_3 = arith.constant 0 : index
    %c0_4 = arith.constant 0 : index
    %3 = vector.load %arg3[%c0_3, %c0_4] : memref<1x192xf32, #tpu.memory_space<vmem>>, vector<1x192xf32>
    %4 = vector.broadcast %3 : vector<1x192xf32> to vector<32x192xf32>
    %5 = arith.addf %2, %4 : vector<32x192xf32>
    %c0_5 = arith.constant 0 : index
    %c0_6 = arith.constant 0 : index
    %6 = vector.load %arg4[%c0_5, %c0_6] : memref<32x192xf32, #tpu.memory_space<vmem>>, vector<32x192xf32>
    tpu.vector_store %arg4[%c0_5, %c0_6], %5 {strides = array<i32>} : memref<32x192xf32, #tpu.memory_space<vmem>>, vector<32x192xf32>,
    return
  }
  func.func @transform_0(%arg0: i32) -> (i32, i32) {
    %c0_i32 = arith.constant 0 : i32
    %c0_i32_0 = arith.constant 0 : i32
    return %arg0, %c0_i32 : i32, i32
  }
  func.func @transform_1(%arg0: i32) -> (i32, i32) {
    %c0_i32 = arith.constant 0 : i32
    %c0_i32_0 = arith.constant 0 : i32
    %c0_i32_1 = arith.constant 0 : i32
    return %c0_i32, %c0_i32_0 : i32, i32
  }
  func.func @transform_2(%arg0: i32) -> (i32, i32) {
    %c0_i32 = arith.constant 0 : i32
    %c0_i32_0 = arith.constant 0 : i32
    %c0_i32_1 = arith.constant 0 : i32
    return %c0_i32, %c0_i32_0 : i32, i32
  }
  func.func @transform_3(%arg0: i32) -> (i32, i32) {
    %c0_i32 = arith.constant 0 : i32
    %c0_i32_0 = arith.constant 0 : i32
    return %arg0, %c0_i32 : i32, i32
  }
}

</mosaic_0001>

<llo_original>
// kernel: tpu_custom_call.1
$region0: #{tpu_custom_call.1}
  #allocation0 [shape = 'u32[]', space=smem, size = 0x4, offset = 0x4, fixed_abs, tag = 'smem constant byte address 0x4 - core index']
  #allocation1 [shape = 'u32[144,128]{1,0:T(1,128)}', space=vmem, size = 0x12000, scoped, tag = 'internal scratch']
  %s0 = inlined_call_operand.hbm [shape: f32[32,64], index: 0, kind: input, shape index: {}]
  %s1 = inlined_call_operand.hbm [shape: f32[64,192], index: 1, kind: input, shape index: {}]
  %s2 = inlined_call_operand.vmem [shape: f32[1,192], index: 2, kind: input, shape index: {}]
  %s3 = inlined_call_operand.hbm [shape: f32[32,192], index: 3, kind: output, shape index: {}]
  %s4 = sld [smem:[#allocation0]]
  $region30: #{tpu_custom_call.1} parent=0
    _
  %s6 = ssub.s32 1, %s4
  %s7 = scalar_select 0, %s6, %s4
  $region1: #{tpu_custom_call.1} parent=0
    #allocation2 [shape = 'u8[16384]{0}', space=vmem, size = 0x4000, scoped, tag = 'input window, operand 0, single buffered']
    #allocation3 [shape = 's32[1]{0}', space=sflag, size = 0x4, scoped, tag = 'scoped memory for tpu_custom_call.1']
    #allocation4 [shape = 's32[1]{0}', space=sflag, size = 0x4, scoped, tag = 'scoped memory for tpu_custom_call.1']
    #allocation5 [shape = 'u8[65536]{0}', space=vmem, size = 0x10000, scoped, tag = 'input window, operand 1, single buffered']
    #allocation6 [shape = 's32[1]{0}', space=sflag, size = 0x4, scoped, tag = 'scoped memory for tpu_custom_call.1']
    #allocation7 [shape = 'u8[32768]{0}', space=vmem, size = 0x8000, scoped, tag = 'output window, operand 0, single buffered']
    %8 = vsyncpa [#allocation3], 0
    %9 = vsyncpa [#allocation6], 0
    %10 = vsyncpa [#allocation4], 0
    // Predicated region
    $region2: #{tpu_custom_call.1} parent=1 // pred_check
      _
    $region3: #{tpu_custom_call.1} parent=1 // pred_check_branch
      %12 = sbr.rel (0) target = $region5
    $region4: #{tpu_custom_call.1} parent=1 // pred_region
      %s14 = ssub.s32 512, 512
      %15 = vsyncadd [#allocation3], %s14
      %s16 = sshll.u32 [#allocation2], 4
      %s17 = int_to_ptr.vmem [resolvable:$true] %s16
      %22 = dma.hbm_to_vmem [thread:$0]  %s0, 512, %s17, [#allocation3], 128, 128, 8
    $region5: #{tpu_custom_call.1} parent=1 // pred_fallthru
      _
    // Predicated region
    $region6: #{tpu_custom_call.1} parent=1 // pred_check
      _
    $region7: #{tpu_custom_call.1} parent=1 // pred_check_branch
      %24 = sbr.rel (0) target = $region9
    $region8: #{tpu_custom_call.1} parent=1 // pred_region
      %s26 = ssub.s32 2048, 2048
      %27 = vsyncadd [#allocation6], %s26
      %s28 = sshll.u32 [#allocation5], 4
      %s29 = int_to_ptr.vmem [resolvable:$true] %s28
      %34 = dma.hbm_to_vmem [thread:$0]  %s1, 2048, %s29, [#allocation6], 256, 256, 16
    $region9: #{tpu_custom_call.1} parent=1 // pred_fallthru
      _
    // Predicated region
    $region10: #{tpu_custom_call.1} parent=1 // pred_check
      _
    $region11: #{tpu_custom_call.1} parent=1 // pred_check_branch
      %36 = sbr.rel (0) target = $region13
    $region12: #{tpu_custom_call.1} parent=1 // pred_region
      _
    $region13: #{tpu_custom_call.1} parent=1 // pred_fallthru
      _
    // Predicated region
    $region14: #{tpu_custom_call.1} parent=1 // pred_check
      _
    $region15: #{tpu_custom_call.1} parent=1 // pred_check_branch
      %38 = sbr.rel (0) target = $region17
    $region16: #{tpu_custom_call.1} parent=1 // pred_region
      %39 = dma.done [#allocation3], 512
    $region17: #{tpu_custom_call.1} parent=1 // pred_fallthru
      _
    // Predicated region
    $region18: #{tpu_custom_call.1} parent=1 // pred_check
      _
    $region19: #{tpu_custom_call.1} parent=1 // pred_check_branch
      %41 = sbr.rel (0) target = $region21
    $region20: #{tpu_custom_call.1} parent=1 // pred_region
      %42 = dma.done [#allocation6], 2048
    $region21: #{tpu_custom_call.1} parent=1 // pred_fallthru
      _
    %v43 = vld [vmem:[#allocation2] sm:$0xff]
    %v44 = vld [vmem:[#allocation2 + $0x8] sm:$0xff]
    %v45 = vld [vmem:[#allocation2 + $0x10] sm:$0xff]
    %v46 = vld [vmem:[#allocation2 + $0x18] sm:$0xff]
    %v47 = vld [vmem:[#allocation5] sm:$0xff]
    %v48 = vld [vmem:[#allocation5 + $0x8] sm:$0xff]
    %v49 = vld [vmem:[#allocation5 + $0x10] sm:$0xff]
    %v50 = vld [vmem:[#allocation5 + $0x18] sm:$0xff]
    %v51 = vld [vmem:[#allocation5 + $0x20] sm:$0xff]
    %v52 = vld [vmem:[#allocation5 + $0x28] sm:$0xff]
    %v53 = vld [vmem:[#allocation5 + $0x30] sm:$0xff]
    %v54 = vld [vmem:[#allocation5 + $0x38] sm:$0xff]
    %v55 = vld [vmem:[#allocation5 + $0x40] sm:$0xff]
    %v56 = vld [vmem:[#allocation5 + $0x48] sm:$0xff]
    %v57 = vld [vmem:[#allocation5 + $0x50] sm:$0xff]
    %v58 = vld [vmem:[#allocation5 + $0x58] sm:$0xff]
    %v59 = vld [vmem:[#allocation5 + $0x60] sm:$0xff]
    %v60 = vld [vmem:[#allocation5 + $0x68] sm:$0xff]
    %v61 = vld [vmem:[#allocation5 + $0x70] sm:$0xff]
    %v62 = vld [vmem:[#allocation5 + $0x78] sm:$0xff]
    %v63 = vld [vmem:[%s2] sm:$0x3]
    %v65 = vlaneseq
    %v66 = vshrl.u32 %v65, 7
    %v67 = vsub.s32 0, %v66
    %v68 = vrot.slane %v63, %v67
    %v69 = vlaneseq
    %v70 = vshrl.u32 %v69, 7
    %v71 = vsub.s32 1, %v70
    %v72 = vrot.slane %v63, %v71
    %vm75 = vcmask 523264
    %v77 = vsel %vm75, %v43, 0
    %v80 = vsel %vm75, %v44, 0
    %v83 = vsel %vm75, %v45, 0
    %v86 = vsel %vm75, %v46, 0
    %88 = vmatprep.subr.mxu0 %v48
    %89 = vmatpush1.msra.mxu0 %v47
    %90 = vmatprep.subr.mxu0 %v50
    %91 = vmatpush1.msra.mxu0 %v49
    %92 = vmatprep.subr.mxu0 %v52
    %93 = vmatpush1.msra.mxu0 %v51
    %94 = vmatprep.subr.mxu0 %v54
    %95 = vmatpush1.msra.mxu0 %v53
    %96 = vmatprep.subr.mxu0 %v56
    %97 = vmatpush1.msra.mxu0 %v55
    %98 = vmatprep.subr.mxu0 %v58
    %99 = vmatpush1.msra.mxu0 %v57
    %100 = vmatprep.subr.mxu0 %v60
    %101 = vmatpush1.msra.mxu0 %v59
    %102 = vmatprep.subr.mxu0 %v62
    %103 = vmatpush1.msra.mxu0 %v61
    %104 = vmatprep.subr.mxu0 0.0
    %105 = vmatpush1.msra.mxu0 0.0
    %106 = vmatprep.subr.mxu0 0.0
    %107 = vmatpush1.msra.mxu0 0.0
    %108 = vmatprep.subr.mxu0 0.0
    %109 = vmatpush1.msra.mxu0 0.0
    %110 = vmatprep.subr.mxu0 0.0
    %111 = vmatpush1.msra.mxu0 0.0
    %112 = vmatprep.subr.mxu0 0.0
    %113 = vmatpush1.msra.mxu0 0.0
    %114 = vmatprep.subr.mxu0 0.0
    %115 = vmatpush1.msra.mxu0 0.0
    %116 = vmatprep.subr.mxu0 0.0
    %117 = vmatpush1.msra.mxu0 0.0
    %118 = vmatprep.subr.mxu0 0.0
    %119 = vmatpush1.msra.mxu0 0.0
    %120 = vmatprep.subr.mxu0 0.0
    %121 = vmatpush1.msra.mxu0 0.0
    %122 = vmatprep.subr.mxu0 0.0
    %123 = vmatpush1.msra.mxu0 0.0
    %124 = vmatprep.subr.mxu0 0.0
    %125 = vmatpush1.msra.mxu0 0.0
    %126 = vmatprep.subr.mxu0 0.0
    %127 = vmatpush1.msra.mxu0 0.0
    %128 = vmatprep.subr.mxu0 0.0
    %129 = vmatpush1.msra.mxu0 0.0
    %130 = vmatprep.subr.mxu0 0.0
    %131 = vmatpush1.msra.mxu0 0.0
    %132 = vmatprep.subr.mxu0 0.0
    %133 = vmatpush1.msra.mxu0 0.0
    %134 = vmatprep.subr.mxu0 0.0
    %135 = vmatpush1.msra.mxu0 0.0
    %136 = vmatprep.subr.mxu0 0.0
    %137 = vmatpush1.msra.mxu0 0.0
    %138 = vmatprep.subr.mxu0 0.0
    %139 = vmatpush1.msra.mxu0 0.0
    %140 = vmatprep.subr.mxu0 0.0
    %141 = vmatpush1.msra.mxu0 0.0
    %142 = vmatprep.subr.mxu0 0.0
    %143 = vmatpush1.msra.mxu0 0.0
    %144 = vmatprep.subr.mxu0 0.0
    %145 = vmatpush1.msra.mxu0 0.0
    %146 = vmatprep.subr.mxu0 0.0
    %147 = vmatpush1.msra.mxu0 0.0
    %148 = vmatprep.subr.mxu0 0.0
    %149 = vmatpush1.msra.mxu0 0.0
    %150 = vmatprep.subr.mxu0 0.0
    %151 = vmatpush1.msra.mxu0 0.0
    %152 = vmatprep.mubr.f32.mxu0 0.0
    %153 = vmatmul.mubr.f32.gmra.mrb[0].mxu0 %v77
    %v154 = vpop.f32.mrb[0].mxu0
    %v155 = vadd.f32 %v68, %v154
    %v156 = vpop.f32.mrb[0].mxu0
    %v157 = vadd.f32 %v72, %v156
    %158 = vmatprep.mubr.f32.mxu0 0.0
    %159 = vmatmul.mubr.f32.gmra.mrb[0].mxu0 %v80
    %v160 = vpop.f32.mrb[0].mxu0
    %v161 = vadd.f32 %v68, %v160
    %v162 = vpop.f32.mrb[0].mxu0
    %v163 = vadd.f32 %v72, %v162
    %164 = vmatprep.mubr.f32.mxu0 0.0
    %165 = vmatmul.mubr.f32.gmra.mrb[0].mxu0 %v83
    %v166 = vpop.f32.mrb[0].mxu0
    %v167 = vadd.f32 %v68, %v166
    %v168 = vpop.f32.mrb[0].mxu0
    %v169 = vadd.f32 %v72, %v168
    %170 = vmatprep.mubr.f32.mxu0 0.0
    %171 = vmatmul.mubr.f32.gmra.mrb[0].mxu0 %v86
    %v172 = vpop.f32.mrb[0].mxu0
    %v173 = vadd.f32 %v68, %v172
    %v174 = vpop.f32.mrb[0].mxu0
    %v175 = vadd.f32 %v72, %v174
    %176 = vdwg.mxu0
    %177 = vst [vmem:[#allocation7] sm:$0xff] %v155
    %178 = vst.msk [vmem:[#allocation7 + $0x8] sm:$0xff] %vm75, %v157
    %179 = vst [vmem:[#allocation7 + $0x10] sm:$0xff] %v161
    %180 = vst.msk [vmem:[#allocation7 + $0x18] sm:$0xff] %vm75, %v163
    %181 = vst [vmem:[#allocation7 + $0x20] sm:$0xff] %v167
    %182 = vst.msk [vmem:[#allocation7 + $0x28] sm:$0xff] %vm75, %v169
    %183 = vst [vmem:[#allocation7 + $0x30] sm:$0xff] %v173
    %184 = vst.msk [vmem:[#allocation7 + $0x38] sm:$0xff] %vm75, %v175
    // Predicated region
    $region22: #{tpu_custom_call.1} parent=1 // pred_check
      _
    $region23: #{tpu_custom_call.1} parent=1 // pred_check_branch
      %186 = sbr.rel (0) target = $region25
    $region24: #{tpu_custom_call.1} parent=1 // pred_region
      %s188 = ssub.s32 1024, 1024
      %189 = vsyncadd [#allocation4], %s188
      %s190 = sshll.u32 [#allocation7], 4
      %s191 = int_to_ptr.vmem [resolvable:$true] %s190
      %196 = dma.vmem_to_hbm [thread:$0]  %s191, 1024, %s3, [#allocation4], 256, 256, 16
    $region25: #{tpu_custom_call.1} parent=1 // pred_fallthru
      _
    // Predicated region
    $region26: #{tpu_custom_call.1} parent=1 // pred_check
      _
    $region27: #{tpu_custom_call.1} parent=1 // pred_check_branch
      %198 = sbr.rel (0) target = $region29
    $region28: #{tpu_custom_call.1} parent=1 // pred_region
      %199 = dma.done [#allocation4], 1024
    $region29: #{tpu_custom_call.1} parent=1 // pred_fallthru
      _
    %200 = vsyncpa [#allocation3], 1
    %201 = vsyncpa [#allocation6], 1
    %202 = vsyncpa [#allocation4], 1

</llo_original>
